<compile_context>
chip_gen: v7x
topology: tpu7x:2x2x1
jax: 0.10.0
libtpu: 0.0.40
codegen_flags: <defaults>
</compile_context>

<pallas_src>
import functools

import jax
import jax.numpy as jnp
from jax.experimental import pallas as pl
from jax.experimental.pallas import tpu as pltpu

_LANE = 128
_NEG_BIG = -9e15


def _round_up(x: int, m: int) -> int:
    return (x + m - 1) // m * m


def _pick_tile(n_pad: int, candidates) -> int:
    for c in candidates:
        if n_pad % c == 0:
            return c
    return _LANE  # n_pad is always a multiple of 128


def _hw_config():
    """Per-generation knobs (v5e / v6e / v7x); conservative defaults otherwise."""
    kind = ""
    try:
        kind = jax.devices()[0].device_kind.lower()
    except Exception:
        pass
    is_v7 = "v7" in kind
    is_v6 = "v6" in kind
    is_v5e = ("v5e" in kind) or ("v5 lite" in kind) or ("v5lite" in kind)
    return {
        # v7x has 2 TensorCores per chip -> make sure the parallel axis has >=2 tiles.
        "two_tc": is_v7,
        # v5e has no bf16 VPU/EUP, so bf16 exp would only add casts there.
        "bf16_exp": is_v6 or is_v7,
        # 64 MiB physical VMEM on v7x -> keep scoped limit at 32 MiB; 128 MiB on
        # v5e/v6e -> 96 MiB leaves room for resident h + Mosaic scratch.
        "vmem_limit": (32 << 20) if is_v7 else ((96 << 20) if (is_v6 or is_v5e) else (32 << 20)),
        # Budget for keeping h fully resident in kernel 2; the gate accounts for
        # the pipeline's double buffer (2x the array size must fit).
        "resident_h_budget": (16 << 20) if is_v7 else ((48 << 20) if (is_v6 or is_v5e) else (16 << 20)),
    }


def precompute_adj_mask(adj, num_nodes=None):
    """(adj > 0) as a zero-padded int8 mask.

    Cache the result across layers / iterations when the graph is static: this is
    a full O(N^2) XLA pass and would otherwise run before every kernel call.
    """
    n = adj.shape[0] if num_nodes is None else num_nodes
    n_pad = _round_up(n, _LANE)
    return jnp.zeros((n_pad, n_pad), jnp.int8).at[:n, :n].set((adj > 0).astype(jnp.int8))


def _h_kernel(x_ref, w_ref, a_ref, h_ref, f1_ref, f2_ref, *, ones_col):
    # h = x @ W on the MXU (bf16 inputs, f32 accumulation).
    h = jnp.dot(x_ref[...], w_ref[...], preferred_element_type=jnp.float32)  # (ti, Fp)
    a = a_ref[...]                                                           # (2, Fp)
    # f1[i] = h[i].a[:F], f2[i] = h[i].a[F:] from the f32 h (VPU mul + XLU lane
    # reduce) -- keeps the attention logits at f32 precision.
    f1_ref[...] = jnp.sum(h * a[0:1, :], axis=-1, keepdims=True)
    f2_ref[...] = jnp.sum(h * a[1:2, :], axis=-1, keepdims=True)
    if ones_col is not None:
        # Spare zero-padded column of h set to 1.0 so the softmax denominator falls
        # out of the p@h MXU matmul in kernel 2 (no XLU row-sum there).
        lane = jax.lax.broadcasted_iota(jnp.int32, h.shape, 1)
        h = jnp.where(lane == ones_col, jnp.float32(1.0), h)
    h_ref[...] = h.astype(jnp.bfloat16)


def _attn_kernel(f1_ref, f2t_ref, h_ref, adj_ref, out_ref,
                 m_sc, l_sc, acc_sc, *,
                 alpha: float, denom_col, use_bf16_exp: bool,
                 h_resident: bool, tj: int, leaky_via_max: bool):
    j = pl.program_id(1)

    @pl.when(j == 0)
    def _():
        m_sc[...] = jnp.full_like(m_sc, -jnp.inf)
        acc_sc[...] = jnp.zeros_like(acc_sc)
        if denom_col is None:
            l_sc[...] = jnp.zeros_like(l_sc)

    # e[i, jj] = LeakyReLU(f1[i] + f2[jj]); adjacency mask folded into a select.
    e = f1_ref[...] + f2t_ref[...]                      # (ti,1)+(1,tj) -> (ti,tj) f32
    if leaky_via_max:
        e = jnp.maximum(e, jnp.float32(alpha) * e)      # identical for 0<=alpha<1
    else:
        e = jnp.where(e > 0, e, jnp.float32(alpha) * e)
    s = jnp.where(adj_ref[...] != 0, e, jnp.float32(_NEG_BIG))

    # Online softmax update over neighbor tiles.
    m_prev = m_sc[...]
    m_new = jnp.maximum(m_prev, jnp.max(s, axis=1, keepdims=True))
    corr = jnp.exp(m_prev - m_new)
    if use_bf16_exp:
        # bf16 EUP on v6e/v7x: ~2x exp throughput; p is consumed as bf16 anyway.
        p = jnp.exp((s - m_new).astype(jnp.bfloat16))
    else:
        # v5e: no bf16 EUP -> keep exp in f32, cast only for the MXU.
        p = jnp.exp(s - m_new).astype(jnp.bfloat16)

    if h_resident:
        start = pl.multiple_of(j * tj, tj)
        hj = h_ref[pl.ds(start, tj), :]                 # slice of the resident h
    else:
        hj = h_ref[...]

    if denom_col is None:
        l_sc[...] = corr * l_sc[...] + jnp.sum(p, axis=-1, keepdims=True,
                                               dtype=jnp.float32)
    acc_sc[...] = corr * acc_sc[...] + jnp.dot(p, hj,
                                               preferred_element_type=jnp.float32)
    m_sc[...] = m_new

    @pl.when(j == pl.num_programs(1) - 1)
    def _():
        acc = acc_sc[...]
        if denom_col is None:
            denom = l_sc[...]
        else:
            denom = acc[:, denom_col:denom_col + 1]     # ones-column == row sum of p
        h_prime = acc * pl.reciprocal(denom, approx=True)
        # ELU (concat=True path); exp only on the clamped-negative branch.
        out_ref[...] = jnp.where(
            h_prime > 0, h_prime, jnp.exp(jnp.minimum(h_prime, 0.0)) - 1.0)


def gat_layer_forward(x, W, a, adj, *, alpha: float):
    """Pallas GATLayer forward (concat=True, eval-mode dropout = identity).

    `adj` may be the raw (N, N) adjacency, or a pre-padded (N_pad, N_pad) int8 mask
    from precompute_adj_mask() (preferred when calling repeatedly on a static graph).
    Precondition (standard GAT usage): every row has >= 1 neighbor (e.g. self-loops);
    fully isolated rows hit the degenerate all-(-9e15) softmax, which normalizes over
    the padded width instead of N.
    """
    N, Fin = x.shape
    Fout = W.shape[1]
    cfg = _hw_config()

    N_pad = _round_up(N, _LANE)
    Fin_p = _round_up(Fin, _LANE)               # clean MXU K layout
    Fp = _round_up(Fout, _LANE)                 # lane-dense output / MXU width

    # Large tiles: per-step VMEM (adj ti*tj int8 + hj tj*Fp bf16 + acc/out ti*Fp f32
    # + ~8*ti*tj bytes of Mosaic intermediates for s/p) stays a few MiB, while big
    # tiles amortize the ~0.35us grid-step overhead and the per-step corr*acc rescale.
    ti = _pick_tile(N_pad, (512, 256, 128))     # query-row tile
    tj = _pick_tile(N_pad, (1024, 512, 256, 128))  # neighbor-column tile
    while cfg["two_tc"] and (N_pad // ti) < 2 and ti > 8:
        ti //= 2                                # v7x: keep both TensorCores busy

    # Zero-pad to tile multiples. Padded W columns / a rows are zero, so padded h
    # columns are exactly 0 and padded outputs are sliced off below.
    x_p = jnp.zeros((N_pad, Fin_p), jnp.bfloat16).at[:N, :Fin].set(x.astype(jnp.bfloat16))
    W_p = jnp.zeros((Fin_p, Fp), jnp.bfloat16).at[:Fin, :Fout].set(W.astype(jnp.bfloat16))
    a_rows = jnp.zeros((2, Fp), jnp.float32)
    a_rows = a_rows.at[0, :Fout].set(a[:Fout, 0].astype(jnp.float32))
    a_rows = a_rows.at[1, :Fout].set(a[Fout:, 0].astype(jnp.float32))

    # Adjacency as an int8 mask (padded columns are 0 -> masked -> exp == 0).
    if adj.dtype == jnp.int8 and adj.shape == (N_pad, N_pad):
        adj_p = adj                              # precomputed / cached mask
    else:
        adj_p = precompute_adj_mask(adj, N)

    # Use a spare padded column of h for the denominator trick when available.
    ones_col = Fout if Fp > Fout else None

    # ---- kernel 1: h = x@W, plus per-node projections f1, f2 ----------------------
    h_bf, f1, f2 = pl.pallas_call(
        functools.partial(_h_kernel, ones_col=ones_col),
        out_shape=(jax.ShapeDtypeStruct((N_pad, Fp), jnp.bfloat16),
                   jax.ShapeDtypeStruct((N_pad, 1), jnp.float32),
                   jax.ShapeDtypeStruct((N_pad, 1), jnp.float32)),
        grid_spec=pltpu.PrefetchScalarGridSpec(
            num_scalar_prefetch=0,
            grid=(N_pad // ti,),
            in_specs=[pl.BlockSpec((ti, Fin_p), lambda i: (i, 0)),
                      pl.BlockSpec((Fin_p, Fp), lambda i: (0, 0)),
                      pl.BlockSpec((2, Fp), lambda i: (0, 0))],
            out_specs=[pl.BlockSpec((ti, Fp), lambda i: (i, 0)),
                       pl.BlockSpec((ti, 1), lambda i: (i, 0)),
                       pl.BlockSpec((ti, 1), lambda i: (i, 0))]),
        compiler_params=pltpu.CompilerParams(
            dimension_semantics=("parallel",),
            vmem_limit_bytes=cfg["vmem_limit"]),
    )(x_p, W_p, a_rows)

    # f2 as a lane-dense row so the attention kernel broadcasts (ti,1)+(1,tj)
    # with no in-kernel transpose.
    f2t = f2.reshape(1, N_pad)

    # Keep h fully VMEM-resident (constant index_map -> DMA'd once, never re-streamed
    # per row tile) when 2x its size (pipeline double buffer) fits the budget.
    h_bytes = N_pad * Fp * 2
    h_resident = (2 * h_bytes) <= cfg["resident_h_budget"]
    if h_resident:
        h_spec = pl.BlockSpec((N_pad, Fp), lambda i, j: (0, 0))
    else:
        h_spec = pl.BlockSpec((tj, Fp), lambda i, j: (j, 0))

    # ---- kernel 2: tiled masked softmax + attention @ h ---------------------------
    out_p = pl.pallas_call(
        functools.partial(_attn_kernel, alpha=float(alpha), denom_col=ones_col,
                          use_bf16_exp=cfg["bf16_exp"], h_resident=h_resident,
                          tj=tj, leaky_via_max=(0.0 <= float(alpha) < 1.0)),
        out_shape=jax.ShapeDtypeStruct((N_pad, Fp), jnp.float32),
        grid_spec=pltpu.PrefetchScalarGridSpec(
            num_scalar_prefetch=0,
            grid=(N_pad // ti, N_pad // tj),
            in_specs=[pl.BlockSpec((ti, 1), lambda i, j: (i, 0)),    # f1 (rows i)
                      pl.BlockSpec((1, tj), lambda i, j: (0, j)),    # f2^T (cols j)
                      h_spec,                                        # h (bf16)
                      pl.BlockSpec((ti, tj), lambda i, j: (i, j))],  # adj mask (int8)
            out_specs=pl.BlockSpec((ti, Fp), lambda i, j: (i, 0)),
            scratch_shapes=[pltpu.VMEM((ti, 1), jnp.float32),   # running max m
                            pltpu.VMEM((ti, 1), jnp.float32),   # running sum l (fallback)
                            pltpu.VMEM((ti, Fp), jnp.float32)]),  # running acc
        compiler_params=pltpu.CompilerParams(
            dimension_semantics=("parallel", "arbitrary"),
            vmem_limit_bytes=cfg["vmem_limit"]),
    )(f1, f2t, h_bf, adj_p)

    return out_p[:N, :Fout]


def _xavier_uniform(key, shape, gain):
    fan_in, fan_out = shape[0], shape[1]
    bound = gain * jnp.sqrt(6.0 / (fan_in + fan_out))
    return jax.random.uniform(key, shape, jnp.float32, -bound, bound)


def _reference_forward(x, W, a, adj, alpha):
    # pure-JAX reference mirroring the PyTorch code (f32 throughout)
    h = x @ W
    N = h.shape[0]
    Fout = W.shape[1]
    a_input = jnp.concatenate(
        [jnp.repeat(h, N, axis=0), jnp.tile(h, (N, 1))], axis=1
    ).reshape(N, N, 2 * Fout)
    e = jnp.squeeze(a_input @ a, axis=2)
    e = jnp.where(e > 0, e, alpha * e)
    att = jnp.where(adj > 0, e, -9e15)
    att = jax.nn.softmax(att, axis=1)
    h_prime = att @ h
    return jnp.where(h_prime > 0, h_prime, jnp.exp(h_prime) - 1.0)


if __name__ == "__main__":
    key = jax.random.PRNGKey(0)
    k_x, k_w, k_a, k_adj = jax.random.split(key, 4)

    N = 8                # number of graph nodes
    in_features = 16
    out_features = 32
    alpha = 0.2          # LeakyReLU negative slope
    gain = 1.414

    # deterministic parameter init (xavier_uniform, gain=1.414, as in __init__)
    W = _xavier_uniform(k_w, (in_features, out_features), gain)
    a = _xavier_uniform(k_a, (2 * out_features, 1), gain)

    # inputs
    x = jax.random.normal(k_x, (N, in_features), jnp.float32)
    adj = (jax.random.uniform(k_adj, (N, N)) > 0.5).astype(jnp.float32)
    adj = jnp.maximum(adj, jnp.eye(N, dtype=jnp.float32))  # self-loops so rows aren't empty

    # Preprocess the adjacency once (cacheable across layers/iterations on a static
    # graph); gat_layer_forward also accepts the raw (N, N) adjacency directly.
    adj_mask = precompute_adj_mask(adj)

    out = gat_layer_forward(x, W, a, adj_mask, alpha=alpha)
    out = jax.block_until_ready(out)

    # Reference at matching input precision (kernel uses bf16 MXU inputs, f32 math),
    # with a bf16-appropriate tolerance.
    x_r = x.astype(jnp.bfloat16).astype(jnp.float32)
    W_r = W.astype(jnp.bfloat16).astype(jnp.float32)
    ref = _reference_forward(x_r, W_r, a, adj, alpha)

    assert out.shape == (N, out_features)
    assert jnp.allclose(out, ref, atol=5e-2, rtol=5e-2), (
        "mismatch vs reference: max abs err = %s" % jnp.max(jnp.abs(out - ref)))

    print("KERNEL_OK")
</pallas_src>

<mosaic_0001>
module attributes {stable_mosaic.version = 11 : i64} {
  func.func @_h_kernel(%arg0: i32, %arg1: memref<128x128xbf16, #tpu.memory_space<vmem>>, %arg2: memref<128x128xbf16, #tpu.memory_space<vmem>>, %arg3: memref<2x128xf32, #tpu.memory_space<vmem>>, %arg4: memref<128x128xbf16, #tpu.memory_space<vmem>>, %arg5: memref<128x1xf32, #tpu.memory_space<vmem>>, %arg6: memref<128x1xf32, #tpu.memory_space<vmem>>) attributes {dimension_semantics = [#tpu.dimension_semantics<parallel>], iteration_bounds = array<i64: 1>, scalar_prefetch = 0 : i64, scratch_operands = 0 : i64, tpu.core_type = #tpu.core_type<tc>, window_params = [{transform_indices = @transform_0, window_bounds = array<i64: 128, 128>}, {pipeline_mode = #tpu.pipeline_mode<synchronous>, transform_indices = @transform_1, window_bounds = array<i64: 128, 128>}, {pipeline_mode = #tpu.pipeline_mode<synchronous>, transform_indices = @transform_2, window_bounds = array<i64: 2, 128>}, {transform_indices = @transform_3, window_bounds = array<i64: 128, 128>}, {transform_indices = @transform_4, window_bounds = array<i64: 128, 1>}, {transform_indices = @transform_5, window_bounds = array<i64: 128, 1>}]} {
    %c0 = arith.constant 0 : index
    %c0_0 = arith.constant 0 : index
    %0 = vector.load %arg1[%c0, %c0_0] : memref<128x128xbf16, #tpu.memory_space<vmem>>, vector<128x128xbf16>
    %c0_1 = arith.constant 0 : index
    %c0_2 = arith.constant 0 : index
    %1 = vector.load %arg2[%c0_1, %c0_2] : memref<128x128xbf16, #tpu.memory_space<vmem>>, vector<128x128xbf16>
    %cst = arith.constant dense<0.000000e+00> : vector<128x128xf32>
    %2 = tpu.matmul %0, %1, %cst {dimension_numbers = #tpu.dot_dimension_numbers<[1], [0], [0], [1], [0, 0, 1, 1], [], []>} : vector<128x128xbf16>, vector<128x128xbf16>, vector<128x128xf32> -> vector<128x128xf32>
    %c0_3 = arith.constant 0 : index
    %c0_4 = arith.constant 0 : index
    %3 = vector.load %arg3[%c0_3, %c0_4] : memref<2x128xf32, #tpu.memory_space<vmem>>, vector<2x128xf32>
    %4 = vector.extract_strided_slice %3 {offsets = [0, 0], sizes = [1, 128], strides = [1, 1]} : vector<2x128xf32> to vector<1x128xf32>
    %5 = vector.broadcast %4 : vector<1x128xf32> to vector<128x128xf32>
    %6 = arith.mulf %2, %5 : vector<128x128xf32>
    %cst_5 = arith.constant dense<0.000000e+00> : vector<128xf32>
    %7 = vector.multi_reduction <add>, %6, %cst_5 [1] : vector<128x128xf32> to vector<128xf32>
    %8 = vector.shape_cast %7 : vector<128xf32> to vector<128x1xf32>
    %c0_6 = arith.constant 0 : index
    %c0_7 = arith.constant 0 : index
    %9 = vector.load %arg5[%c0_6, %c0_7] : memref<128x1xf32, #tpu.memory_space<vmem>>, vector<128x1xf32>
    tpu.vector_store %arg5[%c0_6, %c0_7], %8 {strides = array<i32>} : memref<128x1xf32, #tpu.memory_space<vmem>>, vector<128x1xf32>,
    %10 = vector.extract_strided_slice %3 {offsets = [1, 0], sizes = [1, 128], strides = [1, 1]} : vector<2x128xf32> to vector<1x128xf32>
    %11 = vector.broadcast %10 : vector<1x128xf32> to vector<128x128xf32>
    %12 = arith.mulf %2, %11 : vector<128x128xf32>
    %cst_8 = arith.constant dense<0.000000e+00> : vector<128xf32>
    %13 = vector.multi_reduction <add>, %12, %cst_8 [1] : vector<128x128xf32> to vector<128xf32>
    %14 = vector.shape_cast %13 : vector<128xf32> to vector<128x1xf32>
    %c0_9 = arith.constant 0 : index
    %c0_10 = arith.constant 0 : index
    %15 = vector.load %arg6[%c0_9, %c0_10] : memref<128x1xf32, #tpu.memory_space<vmem>>, vector<128x1xf32>
    tpu.vector_store %arg6[%c0_9, %c0_10], %14 {strides = array<i32>} : memref<128x1xf32, #tpu.memory_space<vmem>>, vector<128x1xf32>,
    %16 = tpu.iota {dimensions = array<i32: 1>} : vector<128x128xi32>
    %c32_i32 = arith.constant 32 : i32
    %17 = vector.broadcast %c32_i32 : i32 to vector<128x128xi32>
    %18 = arith.cmpi eq, %16, %17 : vector<128x128xi32>
    %cst_11 = arith.constant 1.000000e+00 : f32
    %19 = vector.broadcast %cst_11 : f32 to vector<128x128xf32>
    %20 = arith.select %18, %19, %2 : vector<128x128xi1>, vector<128x128xf32>
    %21 = arith.truncf %20 : vector<128x128xf32> to vector<128x128xbf16>
    %c0_12 = arith.constant 0 : index
    %c0_13 = arith.constant 0 : index
    %22 = vector.load %arg4[%c0_12, %c0_13] : memref<128x128xbf16, #tpu.memory_space<vmem>>, vector<128x128xbf16>
    tpu.vector_store %arg4[%c0_12, %c0_13], %21 {strides = array<i32>} : memref<128x128xbf16, #tpu.memory_space<vmem>>, vector<128x128xbf16>,
    return
  }
  func.func @transform_0(%arg0: i32) -> (i32, i32) {
    %c0_i32 = arith.constant 0 : i32
    %c0_i32_0 = arith.constant 0 : i32
    return %arg0, %c0_i32 : i32, i32
  }
  func.func @transform_1(%arg0: i32) -> (i32, i32) {
    %c0_i32 = arith.constant 0 : i32
    %c0_i32_0 = arith.constant 0 : i32
    %c0_i32_1 = arith.constant 0 : i32
    return %c0_i32, %c0_i32_0 : i32, i32
  }
  func.func @transform_2(%arg0: i32) -> (i32, i32) {
    %c0_i32 = arith.constant 0 : i32
    %c0_i32_0 = arith.constant 0 : i32
    %c0_i32_1 = arith.constant 0 : i32
    return %c0_i32, %c0_i32_0 : i32, i32
  }
  func.func @transform_3(%arg0: i32) -> (i32, i32) {
    %c0_i32 = arith.constant 0 : i32
    %c0_i32_0 = arith.constant 0 : i32
    return %arg0, %c0_i32 : i32, i32
  }
  func.func @transform_4(%arg0: i32) -> (i32, i32) {
    %c0_i32 = arith.constant 0 : i32
    %c0_i32_0 = arith.constant 0 : i32
    return %arg0, %c0_i32 : i32, i32
  }
  func.func @transform_5(%arg0: i32) -> (i32, i32) {
    %c0_i32 = arith.constant 0 : i32
    %c0_i32_0 = arith.constant 0 : i32
    return %arg0, %c0_i32 : i32, i32
  }
}

</mosaic_0001>

<llo_original>
// kernel: tpu_custom_call.1
$region0: #{tpu_custom_call.1}
  #allocation0 [shape = 'u32[]', space=smem, size = 0x4, offset = 0x4, fixed_abs, tag = 'smem constant byte address 0x4 - core index']
  #allocation1 [shape = 'u32[144,128]{1,0:T(1,128)}', space=vmem, size = 0x12000, scoped, tag = 'internal scratch']
  %s0 = inlined_call_operand.hbm [shape: bf16[128,128], index: 0, kind: input, shape index: {}]
  %s1 = inlined_call_operand.hbm [shape: bf16[128,128], index: 1, kind: input, shape index: {}]
  %s2 = inlined_call_operand.vmem [shape: f32[2,128], index: 2, kind: input, shape index: {}]
  %s3 = inlined_call_operand.hbm [shape: bf16[128,128], index: 3, kind: output, shape index: {0}]
  %s4 = inlined_call_operand.vmem [shape: f32[128,1], index: 4, kind: output, shape index: {1}]
  %s5 = inlined_call_operand.vmem [shape: f32[128,1], index: 5, kind: output, shape index: {2}]
  %6 = xla_tuple %s3, %s4, %s5
  %s7 = sld [smem:[#allocation0]]
  $region46: #{tpu_custom_call.1} parent=0
    _
  %s9 = ssub.s32 1, %s7
  %s10 = scalar_select 0, %s9, %s7
  $region1: #{tpu_custom_call.1} parent=0
    #allocation2 [shape = 'u8[32768]{0}', space=vmem, size = 0x8000, scoped, tag = 'input window, operand 0, single buffered']
    #allocation3 [shape = 's32[1]{0}', space=sflag, size = 0x4, scoped, tag = 'scoped memory for tpu_custom_call.1']
    #allocation4 [shape = 's32[1]{0}', space=sflag, size = 0x4, scoped, tag = 'scoped memory for tpu_custom_call.1']
    #allocation5 [shape = 'u8[32768]{0}', space=vmem, size = 0x8000, scoped, tag = 'input window, operand 1, single buffered']
    #allocation6 [shape = 's32[1]{0}', space=sflag, size = 0x4, scoped, tag = 'scoped memory for tpu_custom_call.1']
    #allocation7 [shape = 'u8[32768]{0}', space=vmem, size = 0x8000, scoped, tag = 'output window, operand 0, single buffered']
    %11 = vsyncpa [#allocation3], 0
    %12 = vsyncpa [#allocation6], 0
    %13 = vsyncpa [#allocation4], 0
    // Predicated region
    $region2: #{tpu_custom_call.1} parent=1 // pred_check
      _
    $region3: #{tpu_custom_call.1} parent=1 // pred_check_branch
      %15 = sbr.rel (0) target = $region5
    $region4: #{tpu_custom_call.1} parent=1 // pred_region
      %s17 = ssub.s32 1024, 1024
      %18 = vsyncadd [#allocation3], %s17
      %s19 = sshll.u32 [#allocation2], 4
      %s20 = int_to_ptr.vmem [resolvable:$true] %s19
      %25 = dma.hbm_to_vmem [thread:$0]  %s0, 1024, %s20, [#allocation3], 64, 64, 4
    $region5: #{tpu_custom_call.1} parent=1 // pred_fallthru
      _
    // Predicated region
    $region6: #{tpu_custom_call.1} parent=1 // pred_check
      _
    $region7: #{tpu_custom_call.1} parent=1 // pred_check_branch
      %27 = sbr.rel (0) target = $region9
    $region8: #{tpu_custom_call.1} parent=1 // pred_region
      %s29 = ssub.s32 1024, 1024
      %30 = vsyncadd [#allocation6], %s29
      %s31 = sshll.u32 [#allocation5], 4
      %s32 = int_to_ptr.vmem [resolvable:$true] %s31
      %37 = dma.hbm_to_vmem [thread:$0]  %s1, 1024, %s32, [#allocation6], 64, 64, 4
    $region9: #{tpu_custom_call.1} parent=1 // pred_fallthru
      _
    // Predicated region
    $region10: #{tpu_custom_call.1} parent=1 // pred_check
      _
    $region11: #{tpu_custom_call.1} parent=1 // pred_check_branch
      %39 = sbr.rel (0) target = $region13
    $region12: #{tpu_custom_call.1} parent=1 // pred_region
      _
    $region13: #{tpu_custom_call.1} parent=1 // pred_fallthru
      _
    // Predicated region
    $region14: #{tpu_custom_call.1} parent=1 // pred_check
      _
    $region15: #{tpu_custom_call.1} parent=1 // pred_check_branch
      %41 = sbr.rel (0) target = $region17
    $region16: #{tpu_custom_call.1} parent=1 // pred_region
      %42 = dma.done [#allocation3], 1024
    $region17: #{tpu_custom_call.1} parent=1 // pred_fallthru
      _
    // Predicated region
    $region18: #{tpu_custom_call.1} parent=1 // pred_check
      _
    $region19: #{tpu_custom_call.1} parent=1 // pred_check_branch
      %44 = sbr.rel (0) target = $region21
    $region20: #{tpu_custom_call.1} parent=1 // pred_region
      %45 = dma.done [#allocation6], 1024
    $region21: #{tpu_custom_call.1} parent=1 // pred_fallthru
      _
    %v47 = vld [vmem:[#allocation2] sm:$0xf]
    %v48 = vld [vmem:[#allocation2 + $0x4] sm:$0xf]
    %v49 = vld [vmem:[#allocation2 + $0x8] sm:$0xf]
    %v50 = vld [vmem:[#allocation2 + $0xc] sm:$0xf]
    %v51 = vld [vmem:[#allocation2 + $0x10] sm:$0xf]
    %v52 = vld [vmem:[#allocation2 + $0x14] sm:$0xf]
    %v53 = vld [vmem:[#allocation2 + $0x18] sm:$0xf]
    %v54 = vld [vmem:[#allocation2 + $0x1c] sm:$0xf]
    %v55 = vld [vmem:[#allocation2 + $0x20] sm:$0xf]
    %v56 = vld [vmem:[#allocation2 + $0x24] sm:$0xf]
    %v57 = vld [vmem:[#allocation2 + $0x28] sm:$0xf]
    %v58 = vld [vmem:[#allocation2 + $0x2c] sm:$0xf]
    %v59 = vld [vmem:[#allocation2 + $0x30] sm:$0xf]
    %v60 = vld [vmem:[#allocation2 + $0x34] sm:$0xf]
    %v61 = vld [vmem:[#allocation2 + $0x38] sm:$0xf]
    %v62 = vld [vmem:[#allocation2 + $0x3c] sm:$0xf]
    %v63 = vld [vmem:[#allocation5] sm:$0xf]
    %v64 = vld [vmem:[#allocation5 + $0x4] sm:$0xf]
    %v65 = vld [vmem:[#allocation5 + $0x8] sm:$0xf]
    %v66 = vld [vmem:[#allocation5 + $0xc] sm:$0xf]
    %v67 = vld [vmem:[#allocation5 + $0x10] sm:$0xf]
    %v68 = vld [vmem:[#allocation5 + $0x14] sm:$0xf]
    %v69 = vld [vmem:[#allocation5 + $0x18] sm:$0xf]
    %v70 = vld [vmem:[#allocation5 + $0x1c] sm:$0xf]
    %v71 = vld [vmem:[#allocation5 + $0x20] sm:$0xf]
    %v72 = vld [vmem:[#allocation5 + $0x24] sm:$0xf]
    %v73 = vld [vmem:[#allocation5 + $0x28] sm:$0xf]
    %v74 = vld [vmem:[#allocation5 + $0x2c] sm:$0xf]
    %v75 = vld [vmem:[#allocation5 + $0x30] sm:$0xf]
    %v76 = vld [vmem:[#allocation5 + $0x34] sm:$0xf]
    %v77 = vld [vmem:[#allocation5 + $0x38] sm:$0xf]
    %v78 = vld [vmem:[#allocation5 + $0x3c] sm:$0xf]
    %v95 = vunpack.c.l.b16 %v47
    %v96 = vunpack.c.l.b16 %v48
    %v97 = vunpack.c.l.b16 %v49
    %v98 = vunpack.c.l.b16 %v50
    %v99 = vunpack.c.l.b16 %v51
    %v100 = vunpack.c.l.b16 %v52
    %v101 = vunpack.c.l.b16 %v53
    %v102 = vunpack.c.l.b16 %v54
    %v103 = vunpack.c.l.b16 %v55
    %v104 = vunpack.c.l.b16 %v56
    %v105 = vunpack.c.l.b16 %v57
    %v106 = vunpack.c.l.b16 %v58
    %v107 = vunpack.c.l.b16 %v59
    %v108 = vunpack.c.l.b16 %v60
    %v109 = vunpack.c.l.b16 %v61
    %v110 = vunpack.c.l.b16 %v62
    %v111 = vpack.c.b16 %v96, %v95
    %v112 = vpack.c.b16 %v98, %v97
    %v113 = vpack.c.b16 %v100, %v99
    %v114 = vpack.c.b16 %v102, %v101
    %v115 = vpack.c.b16 %v104, %v103
    %v116 = vpack.c.b16 %v106, %v105
    %v117 = vpack.c.b16 %v108, %v107
    %v118 = vpack.c.b16 %v110, %v109
    %v143 = vunpack.c.l.b16 %v63
    %v144 = vunpack.c.l.b16 %v64
    %v145 = vunpack.c.l.b16 %v65
    %v146 = vunpack.c.l.b16 %v66
    %v147 = vunpack.c.l.b16 %v67
    %v148 = vunpack.c.l.b16 %v68
    %v149 = vunpack.c.l.b16 %v69
    %v150 = vunpack.c.l.b16 %v70
    %v151 = vunpack.c.l.b16 %v71
    %v152 = vunpack.c.l.b16 %v72
    %v153 = vunpack.c.l.b16 %v73
    %v154 = vunpack.c.l.b16 %v74
    %v155 = vunpack.c.l.b16 %v75
    %v156 = vunpack.c.l.b16 %v76
    %v157 = vunpack.c.l.b16 %v77
    %v158 = vunpack.c.l.b16 %v78
    %v159 = vpack.c.b16 %v144, %v143
    %v160 = vpack.c.b16 %v146, %v145
    %v161 = vpack.c.b16 %v148, %v147
    %v162 = vpack.c.b16 %v150, %v149
    %v163 = vpack.c.b16 %v152, %v151
    %v164 = vpack.c.b16 %v154, %v153
    %v165 = vpack.c.b16 %v156, %v155
    %v166 = vpack.c.b16 %v158, %v157
    %175 = vmatprep.subr.bf16.mxu0 0
    %176 = vmatpush1.bf16.msra.mxu0 %v159
    %177 = vmatprep.subr.bf16.mxu0 0
    %178 = vmatpush1.bf16.msra.mxu0 %v160
    %179 = vmatprep.subr.bf16.mxu0 0
    %180 = vmatpush1.bf16.msra.mxu0 %v161
    %181 = vmatprep.subr.bf16.mxu0 0
    %182 = vmatpush1.bf16.msra.mxu0 %v162
    %183 = vmatprep.subr.bf16.mxu0 0
    %184 = vmatpush1.bf16.msra.mxu0 %v163
    %185 = vmatprep.subr.bf16.mxu0 0
    %186 = vmatpush1.bf16.msra.mxu0 %v164
    %187 = vmatprep.subr.bf16.mxu0 0
    %188 = vmatpush1.bf16.msra.mxu0 %v165
    %189 = vmatprep.subr.bf16.mxu0 0
    %190 = vmatpush1.bf16.msra.mxu0 %v166
    %191 = vmatprep.subr.bf16.mxu0 0
    %192 = vmatpush1.bf16.msra.mxu0 0
    %193 = vmatprep.subr.bf16.mxu0 0
    %194 = vmatpush1.bf16.msra.mxu0 0
    %195 = vmatprep.subr.bf16.mxu0 0
    %196 = vmatpush1.bf16.msra.mxu0 0
    %197 = vmatprep.subr.bf16.mxu0 0
    %198 = vmatpush1.bf16.msra.mxu0 0
    %199 = vmatprep.subr.bf16.mxu0 0
    %200 = vmatpush1.bf16.msra.mxu0 0
    %201 = vmatprep.subr.bf16.mxu0 0
    %202 = vmatpush1.bf16.msra.mxu0 0
    %203 = vmatprep.subr.bf16.mxu0 0
    %204 = vmatpush1.bf16.msra.mxu0 0
    %205 = vmatprep.subr.bf16.mxu0 0
    %206 = vmatpush1.bf16.msra.mxu0 0
    %207 = vmatprep.mubr.bf16.mxu0 0
    %208 = vmatmul.mubr.bf16.gmra.mrb[0].mxu0 %v111
    %v209 = vpop.f32.mrb[0].mxu0
    %v210 = vadd.f32 0.0, %v209
    %v211 = vpop.f32.mrb[0].mxu0
    %v212 = vpop.f32.mrb[0].mxu0
    %v213 = vadd.f32 0.0, %v212
    %v214 = vpop.f32.mrb[0].mxu0
    %215 = vmatprep.mubr.bf16.mxu0 0
    %216 = vmatmul.mubr.bf16.gmra.mrb[0].mxu0 %v112
    %v217 = vpop.f32.mrb[0].mxu0
    %v218 = vadd.f32 0.0, %v217
    %v219 = vpop.f32.mrb[0].mxu0
    %v220 = vpop.f32.mrb[0].mxu0
    %v221 = vadd.f32 0.0, %v220
    %v222 = vpop.f32.mrb[0].mxu0
    %223 = vmatprep.mubr.bf16.mxu0 0
    %224 = vmatmul.mubr.bf16.gmra.mrb[0].mxu0 %v113
    %v225 = vpop.f32.mrb[0].mxu0
    %v226 = vadd.f32 0.0, %v225
    %v227 = vpop.f32.mrb[0].mxu0
    %v228 = vpop.f32.mrb[0].mxu0
    %v229 = vadd.f32 0.0, %v228
    %v230 = vpop.f32.mrb[0].mxu0
    %231 = vmatprep.mubr.bf16.mxu0 0
    %232 = vmatmul.mubr.bf16.gmra.mrb[0].mxu0 %v114
    %v233 = vpop.f32.mrb[0].mxu0
    %v234 = vadd.f32 0.0, %v233
    %v235 = vpop.f32.mrb[0].mxu0
    %v236 = vpop.f32.mrb[0].mxu0
    %v237 = vadd.f32 0.0, %v236
    %v238 = vpop.f32.mrb[0].mxu0
    %239 = vmatprep.mubr.bf16.mxu0 0
    %240 = vmatmul.mubr.bf16.gmra.mrb[0].mxu0 %v115
    %v241 = vpop.f32.mrb[0].mxu0
    %v242 = vadd.f32 0.0, %v241
    %v243 = vpop.f32.mrb[0].mxu0
    %v244 = vpop.f32.mrb[0].mxu0
    %v245 = vadd.f32 0.0, %v244
    %v246 = vpop.f32.mrb[0].mxu0
    %247 = vmatprep.mubr.bf16.mxu0 0
    %248 = vmatmul.mubr.bf16.gmra.mrb[0].mxu0 %v116
    %v249 = vpop.f32.mrb[0].mxu0
    %v250 = vadd.f32 0.0, %v249
    %v251 = vpop.f32.mrb[0].mxu0
    %v252 = vpop.f32.mrb[0].mxu0
    %v253 = vadd.f32 0.0, %v252
    %v254 = vpop.f32.mrb[0].mxu0
    %255 = vmatprep.mubr.bf16.mxu0 0
    %256 = vmatmul.mubr.bf16.gmra.mrb[0].mxu0 %v117
    %v257 = vpop.f32.mrb[0].mxu0
    %v258 = vadd.f32 0.0, %v257
    %v259 = vpop.f32.mrb[0].mxu0
    %v260 = vpop.f32.mrb[0].mxu0
    %v261 = vadd.f32 0.0, %v260
    %v262 = vpop.f32.mrb[0].mxu0
    %263 = vmatprep.mubr.bf16.mxu0 0
    %264 = vmatmul.mubr.bf16.gmra.mrb[0].mxu0 %v118
    %v265 = vpop.f32.mrb[0].mxu0
    %v266 = vadd.f32 0.0, %v265
    %v267 = vpop.f32.mrb[0].mxu0
    %v268 = vpop.f32.mrb[0].mxu0
    %v269 = vadd.f32 0.0, %v268
    %v270 = vpop.f32.mrb[0].mxu0
    %271 = vdwg.mxu0
    %v272 = vld [vmem:[%s2] sm:$0x3]
    %v273 = vlaneseq
    %v274 = vshrl.u32 %v273, 7
    %v275 = vsub.s32 0, %v274
    %v276 = vrot.slane %v272, %v275
    %v277 = vmul.f32 %v210, %v276
    %v278 = vmul.f32 %v213, %v276
    %v279 = vmul.f32 %v218, %v276
    %v280 = vmul.f32 %v221, %v276
    %v281 = vmul.f32 %v226, %v276
    %v282 = vmul.f32 %v229, %v276
    %v283 = vmul.f32 %v234, %v276
    %v284 = vmul.f32 %v237, %v276
    %v285 = vmul.f32 %v242, %v276
    %v286 = vmul.f32 %v245, %v276
    %v287 = vmul.f32 %v250, %v276
    %v288 = vmul.f32 %v253, %v276
    %v289 = vmul.f32 %v258, %v276
    %v290 = vmul.f32 %v261, %v276
    %v291 = vmul.f32 %v266, %v276
    %v292 = vmul.f32 %v269, %v276
    %293 = vadd.xlane.f32.xlu0 %v277
    %v294 = vpop.xlane.xlu0 %293
    %295 = vadd.xlane.f32.xlu0 %v278
    %v296 = vpop.xlane.xlu0 %295
    %297 = vadd.xlane.f32.xlu0 %v279
    %v298 = vpop.xlane.xlu0 %297
    %299 = vadd.xlane.f32.xlu0 %v280
    %v300 = vpop.xlane.xlu0 %299
    %301 = vadd.xlane.f32.xlu0 %v281
    %v302 = vpop.xlane.xlu0 %301
    %303 = vadd.xlane.f32.xlu0 %v282
    %v304 = vpop.xlane.xlu0 %303
    %305 = vadd.xlane.f32.xlu0 %v283
    %v306 = vpop.xlane.xlu0 %305
    %307 = vadd.xlane.f32.xlu0 %v284
    %v308 = vpop.xlane.xlu0 %307
    %309 = vadd.xlane.f32.xlu0 %v285
    %v310 = vpop.xlane.xlu0 %309
    %311 = vadd.xlane.f32.xlu0 %v286
    %v312 = vpop.xlane.xlu0 %311
    %313 = vadd.xlane.f32.xlu0 %v287
    %v314 = vpop.xlane.xlu0 %313
    %315 = vadd.xlane.f32.xlu0 %v288
    %v316 = vpop.xlane.xlu0 %315
    %317 = vadd.xlane.f32.xlu0 %v289
    %v318 = vpop.xlane.xlu0 %317
    %319 = vadd.xlane.f32.xlu0 %v290
    %v320 = vpop.xlane.xlu0 %319
    %321 = vadd.xlane.f32.xlu0 %v291
    %v322 = vpop.xlane.xlu0 %321
    %323 = vadd.xlane.f32.xlu0 %v292
    %v324 = vpop.xlane.xlu0 %323
    %vm325 = vcmask 7168
    %326 = vst.msk [vmem:[%s4] sm:$0xff] %vm325, %v294
    %327 = vst.msk [vmem:[%s4 + $0x8] sm:$0xff] %vm325, %v296
    %328 = vst.msk [vmem:[%s4 + $0x10] sm:$0xff] %vm325, %v298
    %329 = vst.msk [vmem:[%s4 + $0x18] sm:$0xff] %vm325, %v300
    %330 = vst.msk [vmem:[%s4 + $0x20] sm:$0xff] %vm325, %v302
    %331 = vst.msk [vmem:[%s4 + $0x28] sm:$0xff] %vm325, %v304
    %332 = vst.msk [vmem:[%s4 + $0x30] sm:$0xff] %vm325, %v306
    %333 = vst.msk [vmem:[%s4 + $0x38] sm:$0xff] %vm325, %v308
    %334 = vst.msk [vmem:[%s4 + $0x40] sm:$0xff] %vm325, %v310
    %335 = vst.msk [vmem:[%s4 + $0x48] sm:$0xff] %vm325, %v312
    %336 = vst.msk [vmem:[%s4 + $0x50] sm:$0xff] %vm325, %v314
    %337 = vst.msk [vmem:[%s4 + $0x58] sm:$0xff] %vm325, %v316
    %338 = vst.msk [vmem:[%s4 + $0x60] sm:$0xff] %vm325, %v318
    %339 = vst.msk [vmem:[%s4 + $0x68] sm:$0xff] %vm325, %v320
    %340 = vst.msk [vmem:[%s4 + $0x70] sm:$0xff] %vm325, %v322
    %341 = vst.msk [vmem:[%s4 + $0x78] sm:$0xff] %vm325, %v324
    %v342 = vlaneseq
    %v343 = vshrl.u32 %v342, 7
    %v344 = vsub.s32 1, %v343
    %v345 = vrot.slane %v272, %v344
    %v346 = vmul.f32 %v210, %v345
    %v347 = vmul.f32 %v213, %v345
    %v348 = vmul.f32 %v218, %v345
    %v349 = vmul.f32 %v221, %v345
    %v350 = vmul.f32 %v226, %v345
    %v351 = vmul.f32 %v229, %v345
    %v352 = vmul.f32 %v234, %v345
    %v353 = vmul.f32 %v237, %v345
    %v354 = vmul.f32 %v242, %v345
    %v355 = vmul.f32 %v245, %v345
    %v356 = vmul.f32 %v250, %v345
    %v357 = vmul.f32 %v253, %v345
    %v358 = vmul.f32 %v258, %v345
    %v359 = vmul.f32 %v261, %v345
    %v360 = vmul.f32 %v266, %v345
    %v361 = vmul.f32 %v269, %v345
    %362 = vadd.xlane.f32.xlu0 %v346
    %v363 = vpop.xlane.xlu0 %362
    %364 = vadd.xlane.f32.xlu0 %v347
    %v365 = vpop.xlane.xlu0 %364
    %366 = vadd.xlane.f32.xlu0 %v348
    %v367 = vpop.xlane.xlu0 %366
    %368 = vadd.xlane.f32.xlu0 %v349
    %v369 = vpop.xlane.xlu0 %368
    %370 = vadd.xlane.f32.xlu0 %v350
    %v371 = vpop.xlane.xlu0 %370
    %372 = vadd.xlane.f32.xlu0 %v351
    %v373 = vpop.xlane.xlu0 %372
    %374 = vadd.xlane.f32.xlu0 %v352
    %v375 = vpop.xlane.xlu0 %374
    %376 = vadd.xlane.f32.xlu0 %v353
    %v377 = vpop.xlane.xlu0 %376
    %378 = vadd.xlane.f32.xlu0 %v354
    %v379 = vpop.xlane.xlu0 %378
    %380 = vadd.xlane.f32.xlu0 %v355
    %v381 = vpop.xlane.xlu0 %380
    %382 = vadd.xlane.f32.xlu0 %v356
    %v383 = vpop.xlane.xlu0 %382
    %384 = vadd.xlane.f32.xlu0 %v357
    %v385 = vpop.xlane.xlu0 %384
    %386 = vadd.xlane.f32.xlu0 %v358
    %v387 = vpop.xlane.xlu0 %386
    %388 = vadd.xlane.f32.xlu0 %v359
    %v389 = vpop.xlane.xlu0 %388
    %390 = vadd.xlane.f32.xlu0 %v360
    %v391 = vpop.xlane.xlu0 %390
    %392 = vadd.xlane.f32.xlu0 %v361
    %v393 = vpop.xlane.xlu0 %392
    %394 = vst.msk [vmem:[%s5] sm:$0xff] %vm325, %v363
    %395 = vst.msk [vmem:[%s5 + $0x8] sm:$0xff] %vm325, %v365
    %396 = vst.msk [vmem:[%s5 + $0x10] sm:$0xff] %vm325, %v367
    %397 = vst.msk [vmem:[%s5 + $0x18] sm:$0xff] %vm325, %v369
    %398 = vst.msk [vmem:[%s5 + $0x20] sm:$0xff] %vm325, %v371
    %399 = vst.msk [vmem:[%s5 + $0x28] sm:$0xff] %vm325, %v373
    %400 = vst.msk [vmem:[%s5 + $0x30] sm:$0xff] %vm325, %v375
    %401 = vst.msk [vmem:[%s5 + $0x38] sm:$0xff] %vm325, %v377
    %402 = vst.msk [vmem:[%s5 + $0x40] sm:$0xff] %vm325, %v379
    %403 = vst.msk [vmem:[%s5 + $0x48] sm:$0xff] %vm325, %v381
    %404 = vst.msk [vmem:[%s5 + $0x50] sm:$0xff] %vm325, %v383
    %405 = vst.msk [vmem:[%s5 + $0x58] sm:$0xff] %vm325, %v385
    %406 = vst.msk [vmem:[%s5 + $0x60] sm:$0xff] %vm325, %v387
    %407 = vst.msk [vmem:[%s5 + $0x68] sm:$0xff] %vm325, %v389
    %408 = vst.msk [vmem:[%s5 + $0x70] sm:$0xff] %vm325, %v391
    %409 = vst.msk [vmem:[%s5 + $0x78] sm:$0xff] %vm325, %v393
    %v410 = vlaneseq
    %v411 = vand.u32 %v410, 127
    %vm412 = vcmp.eq.s32.totalorder %v411, 32
    %v413 = vsel %vm412, 1.0, %v210
    %v414 = vsel %vm412, 1.0, %v213
    %v415 = vsel %vm412, 1.0, %v218
    %v416 = vsel %vm412, 1.0, %v221
    %v417 = vsel %vm412, 1.0, %v226
    %v418 = vsel %vm412, 1.0, %v229
    %v419 = vsel %vm412, 1.0, %v234
    %v420 = vsel %vm412, 1.0, %v237
    %v421 = vsel %vm412, 1.0, %v242
    %v422 = vsel %vm412, 1.0, %v245
    %v423 = vsel %vm412, 1.0, %v250
    %v424 = vsel %vm412, 1.0, %v253
    %v425 = vsel %vm412, 1.0, %v258
    %v426 = vsel %vm412, 1.0, %v261
    %v427 = vsel %vm412, 1.0, %v266
    %v428 = vsel %vm412, 1.0, %v269
    %v429 = vpack.c.bf16 %v414, %v413
    %v430 = vpack.c.bf16 %v416, %v415
    %v431 = vpack.c.bf16 %v418, %v417
    %v432 = vpack.c.bf16 %v420, %v419
    %v433 = vpack.c.bf16 %v422, %v421
    %v434 = vpack.c.bf16 %v424, %v423
    %v435 = vpack.c.bf16 %v426, %v425
    %v436 = vpack.c.bf16 %v428, %v427
    %v445 = vunpack.c.l.b16 %v429
    %v446 = vunpack.c.h.b16 %v429
    %v447 = vunpack.c.l.b16 %v430
    %v448 = vunpack.c.h.b16 %v430
    %v449 = vunpack.c.l.b16 %v431
    %v450 = vunpack.c.h.b16 %v431
    %v451 = vunpack.c.l.b16 %v432
    %v452 = vunpack.c.h.b16 %v432
    %v453 = vunpack.c.l.b16 %v433
    %v454 = vunpack.c.h.b16 %v433
    %v455 = vunpack.c.l.b16 %v434
    %v456 = vunpack.c.h.b16 %v434
    %v457 = vunpack.c.l.b16 %v435
    %v458 = vunpack.c.h.b16 %v435
    %v459 = vunpack.c.l.b16 %v436
    %v460 = vunpack.c.h.b16 %v436
    %v461 = vpack.c.b16 %v445, %v445
    %v462 = vpack.c.b16 %v446, %v446
    %v463 = vpack.c.b16 %v447, %v447
    %v464 = vpack.c.b16 %v448, %v448
    %v465 = vpack.c.b16 %v449, %v449
    %v466 = vpack.c.b16 %v450, %v450
    %v467 = vpack.c.b16 %v451, %v451
    %v468 = vpack.c.b16 %v452, %v452
    %v469 = vpack.c.b16 %v453, %v453
    %v470 = vpack.c.b16 %v454, %v454
    %v471 = vpack.c.b16 %v455, %v455
    %v472 = vpack.c.b16 %v456, %v456
    %v473 = vpack.c.b16 %v457, %v457
    %v474 = vpack.c.b16 %v458, %v458
    %v475 = vpack.c.b16 %v459, %v459
    %v476 = vpack.c.b16 %v460, %v460
    %493 = vst [vmem:[#allocation7] sm:$0xf] %v461
    %494 = vst [vmem:[#allocation7 + $0x4] sm:$0xf] %v462
    %495 = vst [vmem:[#allocation7 + $0x8] sm:$0xf] %v463
    %496 = vst [vmem:[#allocation7 + $0xc] sm:$0xf] %v464
    %497 = vst [vmem:[#allocation7 + $0x10] sm:$0xf] %v465
    %498 = vst [vmem:[#allocation7 + $0x14] sm:$0xf] %v466
    %499 = vst [vmem:[#allocation7 + $0x18] sm:$0xf] %v467
    %500 = vst [vmem:[#allocation7 + $0x1c] sm:$0xf] %v468
    %501 = vst [vmem:[#allocation7 + $0x20] sm:$0xf] %v469
    %502 = vst [vmem:[#allocation7 + $0x24] sm:$0xf] %v470
    %503 = vst [vmem:[#allocation7 + $0x28] sm:$0xf] %v471
    %504 = vst [vmem:[#allocation7 + $0x2c] sm:$0xf] %v472
    %505 = vst [vmem:[#allocation7 + $0x30] sm:$0xf] %v473
    %506 = vst [vmem:[#allocation7 + $0x34] sm:$0xf] %v474
    %507 = vst [vmem:[#allocation7 + $0x38] sm:$0xf] %v475
    %508 = vst [vmem:[#allocation7 + $0x3c] sm:$0xf] %v476
    // Predicated region
    $region22: #{tpu_custom_call.1} parent=1 // pred_check
      _
    $region23: #{tpu_custom_call.1} parent=1 // pred_check_branch
      %510 = sbr.rel (0) target = $region25
    $region24: #{tpu_custom_call.1} parent=1 // pred_region
      %s512 = ssub.s32 1024, 1024
      %513 = vsyncadd [#allocation4], %s512
      %s514 = sshll.u32 [#allocation7], 4
      %s515 = int_to_ptr.vmem [resolvable:$true] %s514
      %520 = dma.vmem_to_hbm [thread:$0]  %s515, 1024, %s3, [#allocation4], 64, 64, 4
    $region25: #{tpu_custom_call.1} parent=1 // pred_fallthru
      _
    // Predicated region
    $region26: #{tpu_custom_call.1} parent=1 // pred_check
      _
    $region27: #{tpu_custom_call.1} parent=1 // pred_check_branch
      %522 = sbr.rel (0) target = $region29
    $region28: #{tpu_custom_call.1} parent=1 // pred_region
      _
    $region29: #{tpu_custom_call.1} parent=1 // pred_fallthru
      _
    // Predicated region
    $region30: #{tpu_custom_call.1} parent=1 // pred_check
      _
    $region31: #{tpu_custom_call.1} parent=1 // pred_check_branch
      %524 = sbr.rel (0) target = $region33
    $region32: #{tpu_custom_call.1} parent=1 // pred_region
      _
    $region33: #{tpu_custom_call.1} parent=1 // pred_fallthru
      _
    // Predicated region
    $region34: #{tpu_custom_call.1} parent=1 // pred_check
      _
    $region35: #{tpu_custom_call.1} parent=1 // pred_check_branch
      %526 = sbr.rel (0) target = $region37
    $region36: #{tpu_custom_call.1} parent=1 // pred_region
      %527 = dma.done [#allocation4], 1024
    $region37: #{tpu_custom_call.1} parent=1 // pred_fallthru
      _
    // Predicated region
    $region38: #{tpu_custom_call.1} parent=1 // pred_check
      _
    $region39: #{tpu_custom_call.1} parent=1 // pred_check_branch
      %529 = sbr.rel (0) target = $region41
    $region40: #{tpu_custom_call.1} parent=1 // pred_region
      _
    $region41: #{tpu_custom_call.1} parent=1 // pred_fallthru
      _
    // Predicated region
    $region42: #{tpu_custom_call.1} parent=1 // pred_check
      _
    $region43: #{tpu_custom_call.1} parent=1 // pred_check_branch
      %531 = sbr.rel (0) target = $region45
    $region44: #{tpu_custom_call.1} parent=1 // pred_region
      _
    $region45: #{tpu_custom_call.1} parent=1 // pred_fallthru
      _
    %532 = vsyncpa [#allocation3], 1
    %533 = vsyncpa [#allocation6], 1
    %534 = vsyncpa [#allocation4], 1

</llo_original>
